<compile_context>
chip_gen: v7x
topology: tpu7x:2x2x1
jax: 0.10.0
libtpu: 0.0.40
codegen_flags: <defaults>
</compile_context>

<pallas_src>
import jax
import jax.numpy as jnp
from jax.experimental import pallas as pl
from jax.experimental.pallas import tpu as pltpu

_LANE = 128


def _bcast_mul_kernel(x_ref, s_ref, o_ref):
    # x_ref: (TC, THW); s_ref: (TC, 1) broadcasts across the lane axis on the VPU.
    o_ref[...] = x_ref[...] * s_ref[...]


def broadcast_mul(x, scale):
    """Computes x * scale for x: (N, C, H, W), scale: (N, C, 1, 1)."""
    N, C, H, W = x.shape
    assert scale.shape == (N, C, 1, 1)

    NC = N * C                      # each (n, c) row has its own scalar
    HW = H * W
    x2 = x.reshape(NC, HW)
    s2 = scale.reshape(NC, 1)

    # Sublane quantum depends on dtype packing: 8 rows for 4-byte, 16 for 2-byte,
    # 32 for 1-byte elements.
    sub = 8 * (4 // max(1, jnp.dtype(x.dtype).itemsize))
    c_pad = pl.cdiv(NC, sub) * sub
    hw_pad = pl.cdiv(HW, _LANE) * _LANE
    if c_pad != NC or hw_pad != HW:
        # Pad in the wrapper so the kernel only ever sees lane-dense tiles.
        x2 = jnp.pad(x2, ((0, c_pad - NC), (0, hw_pad - HW)))
        s2 = jnp.pad(s2, ((0, c_pad - NC), (0, 0)))

    # Large lane-dense tiles => deep DMA pipelining, but each tile is <= ~1 MiB
    # so double-buffered (x + out) stays far below v7x's 64 MiB VMEM
    # (and trivially below v5e/v6e's 128 MiB).
    thw = min(hw_pad, 16 * _LANE)   # up to 2048 lanes per tile
    tc = min(c_pad, 16 * sub)       # up to 128 rows (f32) / 256 rows (bf16)
    grid = (pl.cdiv(c_pad, tc), pl.cdiv(hw_pad, thw))

    out = pl.pallas_call(
        _bcast_mul_kernel,
        out_shape=jax.ShapeDtypeStruct((c_pad, hw_pad), x.dtype),
        grid=grid,
        in_specs=[
            pl.BlockSpec((tc, thw), lambda i, j: (i, j)),
            # Scale tile depends only on the channel grid index -> it stays
            # resident in VMEM across the spatial sweep (no per-step 1-lane DMA).
            pl.BlockSpec((tc, 1), lambda i, j: (i, 0)),
        ],
        out_specs=pl.BlockSpec((tc, thw), lambda i, j: (i, j)),
        compiler_params=pltpu.CompilerParams(
            dimension_semantics=("parallel", "parallel"),
        ),
        # TODO(synk): under jit with a donatable input, input_output_aliases={0: 0}
        # would drop the extra HBM output allocation; omitted here to avoid an
        # extra eager-mode copy of a non-donated operand.
    )(x2, s2)

    return out[:NC, :HW].reshape(N, C, H, W)


if __name__ == "__main__":
    key = jax.random.PRNGKey(0)
    k1, k2, k3, k4 = jax.random.split(key, 4)

    # Shapes from the original module: (1, 384, 28, 28) * (1, 384, 1, 1).
    x135 = jax.random.normal(k1, (1, 384, 28, 28), dtype=jnp.float32)
    x140 = jax.random.normal(k2, (1, 384, 1, 1), dtype=jnp.float32)

    y = jax.block_until_ready(broadcast_mul(x135, x140))
    ref = x135 * x140
    assert y.shape == ref.shape
    assert jnp.allclose(y, ref, atol=1e-6, rtol=1e-6)

    # Small, unaligned shape (exercises batch folding + sublane/lane padding).
    xa = jax.random.normal(k3, (2, 6, 9, 11), dtype=jnp.float32)
    sa = jax.random.normal(k4, (2, 6, 1, 1), dtype=jnp.float32)
    ya = jax.block_until_ready(broadcast_mul(xa, sa))
    assert jnp.allclose(ya, xa * sa, atol=1e-6, rtol=1e-6)

    print("KERNEL_OK")
</pallas_src>

<mosaic_0001>
module attributes {stable_mosaic.version = 11 : i64} {
  func.func @_bcast_mul_kernel(%arg0: i32, %arg1: i32, %arg2: memref<128x896xf32, #tpu.memory_space<vmem>>, %arg3: memref<128x1xf32, #tpu.memory_space<vmem>>, %arg4: memref<128x896xf32, #tpu.memory_space<vmem>>) attributes {dimension_semantics = [#tpu.dimension_semantics<parallel>, #tpu.dimension_semantics<parallel>], iteration_bounds = array<i64: 3, 1>, scalar_prefetch = 0 : i64, scratch_operands = 0 : i64, tpu.core_type = #tpu.core_type<tc>, window_params = [{transform_indices = @transform_0, window_bounds = array<i64: 128, 896>}, {transform_indices = @transform_1, window_bounds = array<i64: 128, 1>}, {transform_indices = @transform_2, window_bounds = array<i64: 128, 896>}]} {
    %c0 = arith.constant 0 : index
    %c0_0 = arith.constant 0 : index
    %0 = vector.load %arg2[%c0, %c0_0] : memref<128x896xf32, #tpu.memory_space<vmem>>, vector<128x896xf32>
    %c0_1 = arith.constant 0 : index
    %c0_2 = arith.constant 0 : index
    %1 = vector.load %arg3[%c0_1, %c0_2] : memref<128x1xf32, #tpu.memory_space<vmem>>, vector<128x1xf32>
    %2 = vector.broadcast %1 : vector<128x1xf32> to vector<128x896xf32>
    %3 = arith.mulf %0, %2 : vector<128x896xf32>
    %c0_3 = arith.constant 0 : index
    %c0_4 = arith.constant 0 : index
    %4 = vector.load %arg4[%c0_3, %c0_4] : memref<128x896xf32, #tpu.memory_space<vmem>>, vector<128x896xf32>
    tpu.vector_store %arg4[%c0_3, %c0_4], %3 {strides = array<i32>} : memref<128x896xf32, #tpu.memory_space<vmem>>, vector<128x896xf32>,
    return
  }
  func.func @transform_0(%arg0: i32, %arg1: i32) -> (i32, i32) {
    %c0_i32 = arith.constant 0 : i32
    return %arg0, %arg1 : i32, i32
  }
  func.func @transform_1(%arg0: i32, %arg1: i32) -> (i32, i32) {
    %c0_i32 = arith.constant 0 : i32
    %c0_i32_0 = arith.constant 0 : i32
    return %arg0, %c0_i32 : i32, i32
  }
  func.func @transform_2(%arg0: i32, %arg1: i32) -> (i32, i32) {
    %c0_i32 = arith.constant 0 : i32
    return %arg0, %arg1 : i32, i32
  }
}

</mosaic_0001>

<llo_original>
// kernel: tpu_custom_call.1
$region0: #{tpu_custom_call.1}
  #allocation0 [shape = 'u32[]', space=smem, size = 0x4, offset = 0x4, fixed_abs, tag = 'smem constant byte address 0x4 - core index']
  #allocation1 [shape = 'u32[144,128]{1,0:T(1,128)}', space=vmem, size = 0x12000, scoped, tag = 'internal scratch']
  %s0 = inlined_call_operand.hbm [shape: f32[384,896], index: 0, kind: input, shape index: {}]
  %s1 = inlined_call_operand.vmem [shape: f32[384,1], index: 1, kind: input, shape index: {}]
  %s2 = inlined_call_operand.hbm [shape: f32[384,896], index: 2, kind: output, shape index: {}]
  %s3 = sld [smem:[#allocation0]]
  $region45: #{tpu_custom_call.1} parent=0
    _
  %s5 = ssub.s32 1, %s3
  %s6 = scalar_select 0, %s5, %s3
  $region1: #{tpu_custom_call.1} parent=0
    #allocation2 [shape = 'u8[917504]{0}', space=vmem, size = 0xe0000, scoped, tag = 'input window, operand 0']
    #allocation3 [shape = 's32[2]{0}', space=sflag, size = 0x8, scoped, tag = 'scoped memory for tpu_custom_call.1']
    #allocation4 [shape = 's32[2]{0}', space=sflag, size = 0x8, scoped, tag = 'scoped memory for tpu_custom_call.1']
    #allocation5 [shape = 'u8[917504]{0}', space=vmem, size = 0xe0000, scoped, tag = 'output window, operand 0']
    %7 = vsyncpa [#allocation3], 0
    %s8 = scalar_lea.sflag [#allocation3], 1
    %9 = vsyncpa %s8, 0
    %10 = vsyncpa [#allocation4], 0
    %s11 = scalar_lea.sflag [#allocation4], 1
    %12 = vsyncpa %s11, 0
    loop: start=0, step=1, limit=5
    $region2: #{tpu_custom_call.1} parent=1 // loop_pre_header
      _
    $region3: #{tpu_custom_call.1} parent=1 // loop_header
      %s14 = sphi 0, %s18
      %p15 = scmp.ge.s32.totalorder %s14, 5
      %s21 = sphi 0, %s33
      %s22 = sphi 0, %s29
      %s23 = sphi 0, %s21
      %s24 = sphi 0, %s22
      %s25 = sphi 0, %s23
      %s26 = sphi 0, %s24
      %s38 = sphi 0, %s40
      %s41 = sphi 0, %s38
      %s42 = sphi 0, %s41
      %s58 = sphi 0, %s42
      %s64 = sphi 0, %s66
      %s67 = sphi 0, %s64
      %s68 = sphi 0, %s67
      %s84 = sphi 0, %s68
      %s92 = sphi 0, %s94
      %s95 = sphi 0, %s92
      %s96 = sphi 0, %s95
      %s112 = sphi 0, %s96
    $region4: #{tpu_custom_call.1} parent=1 // loop_header_branch
      %17 = sbr.rel (%p15) target = $region8
    $region5: #{tpu_custom_call.1} parent=1 // loop_body
      %s19 = ssub.s32 %s14, 1
      %s20 = ssub.s32 %s14, 2
      %s27 = sadd.s32 1, %s22
      %p28 = scmp.ge.s32.totalorder %s27, 1
      %s29 = scalar_select %p28, 0, %s27
      %s30 = sadd.s32 1, %s21
      %s31 = scalar_select %p28, %s30, %s21
      %p32 = scmp.ge.s32.totalorder %s31, 3
      %s33 = scalar_select %p32, 0, %s31
      %s34 = ssub.s32 %s21, %s33
      %s35 = ssub.s32 %s22, %s29
      %s36 = sor.u32 %s34, %s35
      %p37 = scmp.eq.s32.totalorder %s36, 0
      %s39 = sadd.s32 %s38, 1
      %s40 = scalar_select %p37, %s38, %s39
      %p43 = pneg %p37
      %p44 = scmp.eq.s32.totalorder %s14, 2
      %p45 = por %p43, %p44
      %p46 = scmp.ne.s32.totalorder %s38, %s41
      %p47 = scmp.eq.s32.totalorder %s14, 0
      %p48 = por %p46, %p47
      %p49 = scmp.ne.s32.totalorder %s38, %s41
      %p50 = scmp.eq.s32.totalorder %s19, 2
      %p51 = por %p49, %p50
      %p52 = scmp.ne.s32.totalorder %s41, %s42
      %p53 = scmp.eq.s32.totalorder %s19, 0
      %p54 = por %p52, %p53
      %p55 = scmp.ne.s32.totalorder %s41, %s42
      %p56 = scmp.eq.s32.totalorder %s20, 2
      %p57 = por %p55, %p56
      %p59 = scmp.ne.s32.totalorder %s42, %s58
      %p60 = scmp.eq.s32.totalorder %s20, 0
      %p61 = por %p59, %p60
      %s62 = ssub.s32 %s21, %s33
      %p63 = scmp.eq.s32.totalorder %s62, 0
      %s65 = sadd.s32 %s64, 1
      %s66 = scalar_select %p63, %s64, %s65
      %p69 = pneg %p63
      %p70 = scmp.eq.s32.totalorder %s14, 2
      %p71 = por %p69, %p70
      %p72 = scmp.ne.s32.totalorder %s64, %s67
      %p73 = scmp.eq.s32.totalorder %s14, 0
      %p74 = por %p72, %p73
      %p75 = scmp.ne.s32.totalorder %s64, %s67
      %p76 = scmp.eq.s32.totalorder %s19, 2
      %p77 = por %p75, %p76
      %p78 = scmp.ne.s32.totalorder %s67, %s68
      %p79 = scmp.eq.s32.totalorder %s19, 0
      %p80 = por %p78, %p79
      %p81 = scmp.ne.s32.totalorder %s67, %s68
      %p82 = scmp.eq.s32.totalorder %s20, 2
      %p83 = por %p81, %p82
      %p85 = scmp.ne.s32.totalorder %s68, %s84
      %p86 = scmp.eq.s32.totalorder %s20, 0
      %p87 = por %p85, %p86
      %s88 = ssub.s32 %s21, %s33
      %s89 = ssub.s32 %s22, %s29
      %s90 = sor.u32 %s88, %s89
      %p91 = scmp.eq.s32.totalorder %s90, 0
      %s93 = sadd.s32 %s92, 1
      %s94 = scalar_select %p91, %s92, %s93
      %p97 = pneg %p91
      %p98 = scmp.eq.s32.totalorder %s14, 2
      %p99 = por %p97, %p98
      %p100 = scmp.ne.s32.totalorder %s92, %s95
      %p101 = scmp.eq.s32.totalorder %s14, 0
      %p102 = por %p100, %p101
      %p103 = scmp.ne.s32.totalorder %s92, %s95
      %p104 = scmp.eq.s32.totalorder %s19, 2
      %p105 = por %p103, %p104
      %p106 = scmp.ne.s32.totalorder %s95, %s96
      %p107 = scmp.eq.s32.totalorder %s19, 0
      %p108 = por %p106, %p107
      %p109 = scmp.ne.s32.totalorder %s95, %s96
      %p110 = scmp.eq.s32.totalorder %s20, 2
      %p111 = por %p109, %p110
      %p113 = scmp.ne.s32.totalorder %s96, %s112
      %p114 = scmp.eq.s32.totalorder %s20, 0
      %p115 = por %p113, %p114
      %p116 = scmp.le.s32.totalorder 1, %s14
      %p117 = scmp.lt.s32.totalorder %s14, 4
      %p118 = pnand %p116, %p117
      %p119 = pneg %p118
      // Predicated region
      $region9: #{tpu_custom_call.1} parent=5 // pred_check
        _
      $region10: #{tpu_custom_call.1} parent=5 // pred_check_branch
        %121 = sbr.rel (%p118) target = $region12
      $region11: #{tpu_custom_call.1} parent=5 // pred_region
        %s122 = ssub.s32 %s14, 1
      $region12: #{tpu_custom_call.1} parent=5 // pred_fallthru
        _
      %p123 = scmp.lt.s32.totalorder %s14, 3
      // Predicated region
      $region13: #{tpu_custom_call.1} parent=5 // pred_check
        %p124 = pneg %p123
      $region14: #{tpu_custom_call.1} parent=5 // pred_check_branch
        %126 = sbr.rel (%p124) target = $region16
      $region15: #{tpu_custom_call.1} parent=5 // pred_region
        // Predicated region
        $region17: #{tpu_custom_call.1} parent=15 // pred_check
          %p127 = pneg %p48
        $region18: #{tpu_custom_call.1} parent=15 // pred_check_branch
          %129 = sbr.rel (%p127) target = $region20
        $region19: #{tpu_custom_call.1} parent=15 // pred_region
          %s130 = sand.u32 %s38, 1
          %s131 = scalar_lea.sflag [#allocation3], %s130
          %s132 = sand.u32 %s38, 1
          %s133 = smul.addr %s132, 896
          %s134 = scalar_lea.vmem [#allocation2], %s133
          %s135 = smul.u32 16, %s21
          %s136 = smul.u32 7, %s22
          %s138 = ssub.s32 14336, 14336
          %139 = vsyncadd %s131, %s138
          %s140 = smul.addr %s135, 7
          %s141 = sadd.s32 %s136, %s140
          %s142 = smul.addr %s141, 128
          %s143 = scalar_lea.hbm %s0, %s142
          %s144 = sshll.u32 %s134, 4
          %s145 = int_to_ptr.vmem [resolvable:$true] %s144
          %150 = dma.hbm_to_vmem [thread:$0]  %s143, 14336, %s145, %s131, 896, 896, 56
        $region20: #{tpu_custom_call.1} parent=15 // pred_fallthru
          _
        // Predicated region
        $region21: #{tpu_custom_call.1} parent=15 // pred_check
          %p151 = pneg %p74
        $region22: #{tpu_custom_call.1} parent=15 // pred_check_branch
          %153 = sbr.rel (%p151) target = $region24
        $region23: #{tpu_custom_call.1} parent=15 // pred_region
          %s154 = smul.u32 16, %s21
          %p155 = scmp.lt.s32.totalorder %s154, 47
          %s156 = scalar_select %p155, %s154, 47
          %s157 = smul.addr %s156, 8
          %s158 = scalar_lea.vmem %s1, %s157
          %s159 = smul.u32 16, %s21
        $region24: #{tpu_custom_call.1} parent=15 // pred_fallthru
          _
      $region16: #{tpu_custom_call.1} parent=5 // pred_fallthru
        _
      %p160 = scmp.le.s32.totalorder 1, %s14
      %p161 = scmp.lt.s32.totalorder %s14, 4
      %p162 = pnand %p160, %p161
      %p163 = pneg %p162
      // Predicated region
      $region25: #{tpu_custom_call.1} parent=5 // pred_check
        _
      $region26: #{tpu_custom_call.1} parent=5 // pred_check_branch
        %165 = sbr.rel (%p162) target = $region28
      $region27: #{tpu_custom_call.1} parent=5 // pred_region
        %s166 = ssub.s32 %s14, 1
        %s167 = sand.u32 %s41, 1
        %s168 = scalar_lea.sflag [#allocation3], %s167
        %s169 = sand.u32 %s41, 1
        %s170 = smul.addr %s169, 896
        %s171 = scalar_lea.vmem [#allocation2], %s170
        // Predicated region
        $region29: #{tpu_custom_call.1} parent=27 // pred_check
          %p172 = pneg %p54
        $region30: #{tpu_custom_call.1} parent=27 // pred_check_branch
          %174 = sbr.rel (%p172) target = $region32
        $region31: #{tpu_custom_call.1} parent=27 // pred_region
          %175 = dma.done %s168, 14336
        $region32: #{tpu_custom_call.1} parent=27 // pred_fallthru
          _
        %s176 = sand.u32 %s41, 1
        %s177 = scalar_lea.sflag [#allocation3], %s176
        %s178 = sand.u32 %s41, 1
        %s179 = smul.addr %s178, 896
        %s180 = scalar_lea.vmem [#allocation2], %s179
        %p181 = pneg %p54
        %p182 = pneg %p51
        %s183 = smul.u32 16, %s23
        %p184 = scmp.lt.s32.totalorder %s183, 47
        %s185 = scalar_select %p184, %s183, 47
        %s186 = smul.addr %s185, 8
        %s187 = scalar_lea.vmem %s1, %s186
        %p188 = pneg %p80
        %p189 = pneg %p77
        %p190 = pneg %p108
        %p191 = pneg %p105
        %s192 = sand.u32 %s95, 1
        %s193 = scalar_lea.sflag [#allocation4], %s192
        %s194 = sand.u32 %s95, 1
        %s195 = smul.addr %s194, 896
        %s196 = scalar_lea.vmem [#allocation5], %s195
        %s197 = smul.u32 16, %s23
        %s198 = smul.u32 7, %s24
        %s199 = smul.u32 16, %s23
        %p200 = scmp.lt.s32.totalorder %s199, 47
        %s201 = scalar_select %p200, %s199, 47
        %s202 = smul.addr %s201, 8
        %s203 = scalar_lea.vmem %s1, %s202
        %s204 = smul.u32 16, %s23
        %s205 = smul.u32 16, %s23
        %s206 = smul.u32 7, %s24
        %v207 = vld [vmem:[%s171] sm:$0xff]
        %v208 = vld [vmem:[%s171 + $0x8] sm:$0xff]
        %v209 = vld [vmem:[%s171 + $0x10] sm:$0xff]
        %v210 = vld [vmem:[%s171 + $0x18] sm:$0xff]
        %v211 = vld [vmem:[%s171 + $0x20] sm:$0xff]
        %v212 = vld [vmem:[%s171 + $0x28] sm:$0xff]
        %v213 = vld [vmem:[%s171 + $0x30] sm:$0xff]
        %v214 = vld [vmem:[%s171 + $0x38] sm:$0xff]
        %v215 = vld [vmem:[%s171 + $0x40] sm:$0xff]
        %v216 = vld [vmem:[%s171 + $0x48] sm:$0xff]
        %v217 = vld [vmem:[%s171 + $0x50] sm:$0xff]
        %v218 = vld [vmem:[%s171 + $0x58] sm:$0xff]
        %v219 = vld [vmem:[%s171 + $0x60] sm:$0xff]
        %v220 = vld [vmem:[%s171 + $0x68] sm:$0xff]
        %v221 = vld [vmem:[%s171 + $0x70] sm:$0xff]
        %v222 = vld [vmem:[%s171 + $0x78] sm:$0xff]
        %v223 = vld [vmem:[%s171 + $0x80] sm:$0xff]
        %v224 = vld [vmem:[%s171 + $0x88] sm:$0xff]
        %v225 = vld [vmem:[%s171 + $0x90] sm:$0xff]
        %v226 = vld [vmem:[%s171 + $0x98] sm:$0xff]
        %v227 = vld [vmem:[%s171 + $0xa0] sm:$0xff]
        %v228 = vld [vmem:[%s171 + $0xa8] sm:$0xff]
        %v229 = vld [vmem:[%s171 + $0xb0] sm:$0xff]
        %v230 = vld [vmem:[%s171 + $0xb8] sm:$0xff]
        %v231 = vld [vmem:[%s171 + $0xc0] sm:$0xff]
        %v232 = vld [vmem:[%s171 + $0xc8] sm:$0xff]
        %v233 = vld [vmem:[%s171 + $0xd0] sm:$0xff]
        %v234 = vld [vmem:[%s171 + $0xd8] sm:$0xff]
        %v235 = vld [vmem:[%s171 + $0xe0] sm:$0xff]
        %v236 = vld [vmem:[%s171 + $0xe8] sm:$0xff]
        %v237 = vld [vmem:[%s171 + $0xf0] sm:$0xff]
        %v238 = vld [vmem:[%s171 + $0xf8] sm:$0xff]
        %v239 = vld [vmem:[%s171 + $0x100] sm:$0xff]
        %v240 = vld [vmem:[%s171 + $0x108] sm:$0xff]
        %v241 = vld [vmem:[%s171 + $0x110] sm:$0xff]
        %v242 = vld [vmem:[%s171 + $0x118] sm:$0xff]
        %v243 = vld [vmem:[%s171 + $0x120] sm:$0xff]
        %v244 = vld [vmem:[%s171 + $0x128] sm:$0xff]
        %v245 = vld [vmem:[%s171 + $0x130] sm:$0xff]
        %v246 = vld [vmem:[%s171 + $0x138] sm:$0xff]
        %v247 = vld [vmem:[%s171 + $0x140] sm:$0xff]
        %v248 = vld [vmem:[%s171 + $0x148] sm:$0xff]
        %v249 = vld [vmem:[%s171 + $0x150] sm:$0xff]
        %v250 = vld [vmem:[%s171 + $0x158] sm:$0xff]
        %v251 = vld [vmem:[%s171 + $0x160] sm:$0xff]
        %v252 = vld [vmem:[%s171 + $0x168] sm:$0xff]
        %v253 = vld [vmem:[%s171 + $0x170] sm:$0xff]
        %v254 = vld [vmem:[%s171 + $0x178] sm:$0xff]
        %v255 = vld [vmem:[%s171 + $0x180] sm:$0xff]
        %v256 = vld [vmem:[%s171 + $0x188] sm:$0xff]
        %v257 = vld [vmem:[%s171 + $0x190] sm:$0xff]
        %v258 = vld [vmem:[%s171 + $0x198] sm:$0xff]
        %v259 = vld [vmem:[%s171 + $0x1a0] sm:$0xff]
        %v260 = vld [vmem:[%s171 + $0x1a8] sm:$0xff]
        %v261 = vld [vmem:[%s171 + $0x1b0] sm:$0xff]
        %v262 = vld [vmem:[%s171 + $0x1b8] sm:$0xff]
        %v263 = vld [vmem:[%s171 + $0x1c0] sm:$0xff]
        %v264 = vld [vmem:[%s171 + $0x1c8] sm:$0xff]
        %v265 = vld [vmem:[%s171 + $0x1d0] sm:$0xff]
        %v266 = vld [vmem:[%s171 + $0x1d8] sm:$0xff]
        %v267 = vld [vmem:[%s171 + $0x1e0] sm:$0xff]
        %v268 = vld [vmem:[%s171 + $0x1e8] sm:$0xff]
        %v269 = vld [vmem:[%s171 + $0x1f0] sm:$0xff]
        %v270 = vld [vmem:[%s171 + $0x1f8] sm:$0xff]
        %v271 = vld [vmem:[%s171 + $0x200] sm:$0xff]
        %v272 = vld [vmem:[%s171 + $0x208] sm:$0xff]
        %v273 = vld [vmem:[%s171 + $0x210] sm:$0xff]
        %v274 = vld [vmem:[%s171 + $0x218] sm:$0xff]
        %v275 = vld [vmem:[%s171 + $0x220] sm:$0xff]
        %v276 = vld [vmem:[%s171 + $0x228] sm:$0xff]
        %v277 = vld [vmem:[%s171 + $0x230] sm:$0xff]
        %v278 = vld [vmem:[%s171 + $0x238] sm:$0xff]
        %v279 = vld [vmem:[%s171 + $0x240] sm:$0xff]
        %v280 = vld [vmem:[%s171 + $0x248] sm:$0xff]
        %v281 = vld [vmem:[%s171 + $0x250] sm:$0xff]
        %v282 = vld [vmem:[%s171 + $0x258] sm:$0xff]
        %v283 = vld [vmem:[%s171 + $0x260] sm:$0xff]
        %v284 = vld [vmem:[%s171 + $0x268] sm:$0xff]
        %v285 = vld [vmem:[%s171 + $0x270] sm:$0xff]
        %v286 = vld [vmem:[%s171 + $0x278] sm:$0xff]
        %v287 = vld [vmem:[%s171 + $0x280] sm:$0xff]
        %v288 = vld [vmem:[%s171 + $0x288] sm:$0xff]
        %v289 = vld [vmem:[%s171 + $0x290] sm:$0xff]
        %v290 = vld [vmem:[%s171 + $0x298] sm:$0xff]
        %v291 = vld [vmem:[%s171 + $0x2a0] sm:$0xff]
        %v292 = vld [vmem:[%s171 + $0x2a8] sm:$0xff]
        %v293 = vld [vmem:[%s171 + $0x2b0] sm:$0xff]
        %v294 = vld [vmem:[%s171 + $0x2b8] sm:$0xff]
        %v295 = vld [vmem:[%s171 + $0x2c0] sm:$0xff]
        %v296 = vld [vmem:[%s171 + $0x2c8] sm:$0xff]
        %v297 = vld [vmem:[%s171 + $0x2d0] sm:$0xff]
        %v298 = vld [vmem:[%s171 + $0x2d8] sm:$0xff]
        %v299 = vld [vmem:[%s171 + $0x2e0] sm:$0xff]
        %v300 = vld [vmem:[%s171 + $0x2e8] sm:$0xff]
        %v301 = vld [vmem:[%s171 + $0x2f0] sm:$0xff]
        %v302 = vld [vmem:[%s171 + $0x2f8] sm:$0xff]
        %v303 = vld [vmem:[%s171 + $0x300] sm:$0xff]
        %v304 = vld [vmem:[%s171 + $0x308] sm:$0xff]
        %v305 = vld [vmem:[%s171 + $0x310] sm:$0xff]
        %v306 = vld [vmem:[%s171 + $0x318] sm:$0xff]
        %v307 = vld [vmem:[%s171 + $0x320] sm:$0xff]
        %v308 = vld [vmem:[%s171 + $0x328] sm:$0xff]
        %v309 = vld [vmem:[%s171 + $0x330] sm:$0xff]
        %v310 = vld [vmem:[%s171 + $0x338] sm:$0xff]
        %v311 = vld [vmem:[%s171 + $0x340] sm:$0xff]
        %v312 = vld [vmem:[%s171 + $0x348] sm:$0xff]
        %v313 = vld [vmem:[%s171 + $0x350] sm:$0xff]
        %v314 = vld [vmem:[%s171 + $0x358] sm:$0xff]
        %v315 = vld [vmem:[%s171 + $0x360] sm:$0xff]
        %v316 = vld [vmem:[%s171 + $0x368] sm:$0xff]
        %v317 = vld [vmem:[%s171 + $0x370] sm:$0xff]
        %v318 = vld [vmem:[%s171 + $0x378] sm:$0xff]
        %v319 = vld [vmem:[%s203] sm:$0xff]
        %v320 = vld [vmem:[%s203 + $0x8] sm:$0xff]
        %v321 = vld [vmem:[%s203 + $0x10] sm:$0xff]
        %v322 = vld [vmem:[%s203 + $0x18] sm:$0xff]
        %v323 = vld [vmem:[%s203 + $0x20] sm:$0xff]
        %v324 = vld [vmem:[%s203 + $0x28] sm:$0xff]
        %v325 = vld [vmem:[%s203 + $0x30] sm:$0xff]
        %v326 = vld [vmem:[%s203 + $0x38] sm:$0xff]
        %v327 = vld [vmem:[%s203 + $0x40] sm:$0xff]
        %v328 = vld [vmem:[%s203 + $0x48] sm:$0xff]
        %v329 = vld [vmem:[%s203 + $0x50] sm:$0xff]
        %v330 = vld [vmem:[%s203 + $0x58] sm:$0xff]
        %v331 = vld [vmem:[%s203 + $0x60] sm:$0xff]
        %v332 = vld [vmem:[%s203 + $0x68] sm:$0xff]
        %v333 = vld [vmem:[%s203 + $0x70] sm:$0xff]
        %v334 = vld [vmem:[%s203 + $0x78] sm:$0xff]
        %336 = vset.pattern.permute.xlu0 0
        %337 = vperm.xlu0 %336, %v319
        %v338 = vpop.permute.xlu0 %337
        %341 = vset.pattern.permute.xlu0 0
        %342 = vperm.xlu0 %341, %v320
        %v343 = vpop.permute.xlu0 %342
        %346 = vset.pattern.permute.xlu0 0
        %347 = vperm.xlu0 %346, %v321
        %v348 = vpop.permute.xlu0 %347
        %351 = vset.pattern.permute.xlu0 0
        %352 = vperm.xlu0 %351, %v322
        %v353 = vpop.permute.xlu0 %352
        %356 = vset.pattern.permute.xlu0 0
        %357 = vperm.xlu0 %356, %v323
        %v358 = vpop.permute.xlu0 %357
        %361 = vset.pattern.permute.xlu0 0
        %362 = vperm.xlu0 %361, %v324
        %v363 = vpop.permute.xlu0 %362
        %366 = vset.pattern.permute.xlu0 0
        %367 = vperm.xlu0 %366, %v325
        %v368 = vpop.permute.xlu0 %367
        %371 = vset.pattern.permute.xlu0 0
        %372 = vperm.xlu0 %371, %v326
        %v373 = vpop.permute.xlu0 %372
        %376 = vset.pattern.permute.xlu0 0
        %377 = vperm.xlu0 %376, %v327
        %v378 = vpop.permute.xlu0 %377
        %381 = vset.pattern.permute.xlu0 0
        %382 = vperm.xlu0 %381, %v328
        %v383 = vpop.permute.xlu0 %382
        %386 = vset.pattern.permute.xlu0 0
        %387 = vperm.xlu0 %386, %v329
        %v388 = vpop.permute.xlu0 %387
        %391 = vset.pattern.permute.xlu0 0
        %392 = vperm.xlu0 %391, %v330
        %v393 = vpop.permute.xlu0 %392
        %396 = vset.pattern.permute.xlu0 0
        %397 = vperm.xlu0 %396, %v331
        %v398 = vpop.permute.xlu0 %397
        %401 = vset.pattern.permute.xlu0 0
        %402 = vperm.xlu0 %401, %v332
        %v403 = vpop.permute.xlu0 %402
        %406 = vset.pattern.permute.xlu0 0
        %407 = vperm.xlu0 %406, %v333
        %v408 = vpop.permute.xlu0 %407
        %411 = vset.pattern.permute.xlu0 0
        %412 = vperm.xlu0 %411, %v334
        %v413 = vpop.permute.xlu0 %412
        %v415 = vmul.f32 %v207, %v338
        %v416 = vmul.f32 %v208, %v338
        %v417 = vmul.f32 %v209, %v338
        %v418 = vmul.f32 %v210, %v338
        %v419 = vmul.f32 %v211, %v338
        %v420 = vmul.f32 %v212, %v338
        %v421 = vmul.f32 %v213, %v338
        %v422 = vmul.f32 %v214, %v343
        %v423 = vmul.f32 %v215, %v343
        %v424 = vmul.f32 %v216, %v343
        %v425 = vmul.f32 %v217, %v343
        %v426 = vmul.f32 %v218, %v343
        %v427 = vmul.f32 %v219, %v343
        %v428 = vmul.f32 %v220, %v343
        %v429 = vmul.f32 %v221, %v348
        %v430 = vmul.f32 %v222, %v348
        %v431 = vmul.f32 %v223, %v348
        %v432 = vmul.f32 %v224, %v348
        %v433 = vmul.f32 %v225, %v348
        %v434 = vmul.f32 %v226, %v348
        %v435 = vmul.f32 %v227, %v348
        %v436 = vmul.f32 %v228, %v353
        %v437 = vmul.f32 %v229, %v353
        %v438 = vmul.f32 %v230, %v353
        %v439 = vmul.f32 %v231, %v353
        %v440 = vmul.f32 %v232, %v353
        %v441 = vmul.f32 %v233, %v353
        %v442 = vmul.f32 %v234, %v353
        %v443 = vmul.f32 %v235, %v358
        %v444 = vmul.f32 %v236, %v358
        %v445 = vmul.f32 %v237, %v358
        %v446 = vmul.f32 %v238, %v358
        %v447 = vmul.f32 %v239, %v358
        %v448 = vmul.f32 %v240, %v358
        %v449 = vmul.f32 %v241, %v358
        %v450 = vmul.f32 %v242, %v363
        %v451 = vmul.f32 %v243, %v363
        %v452 = vmul.f32 %v244, %v363
        %v453 = vmul.f32 %v245, %v363
        %v454 = vmul.f32 %v246, %v363
        %v455 = vmul.f32 %v247, %v363
        %v456 = vmul.f32 %v248, %v363
        %v457 = vmul.f32 %v249, %v368
        %v458 = vmul.f32 %v250, %v368
        %v459 = vmul.f32 %v251, %v368
        %v460 = vmul.f32 %v252, %v368
        %v461 = vmul.f32 %v253, %v368
        %v462 = vmul.f32 %v254, %v368
        %v463 = vmul.f32 %v255, %v368
        %v464 = vmul.f32 %v256, %v373
        %v465 = vmul.f32 %v257, %v373
        %v466 = vmul.f32 %v258, %v373
        %v467 = vmul.f32 %v259, %v373
        %v468 = vmul.f32 %v260, %v373
        %v469 = vmul.f32 %v261, %v373
        %v470 = vmul.f32 %v262, %v373
        %v471 = vmul.f32 %v263, %v378
        %v472 = vmul.f32 %v264, %v378
        %v473 = vmul.f32 %v265, %v378
        %v474 = vmul.f32 %v266, %v378
        %v475 = vmul.f32 %v267, %v378
        %v476 = vmul.f32 %v268, %v378
        %v477 = vmul.f32 %v269, %v378
        %v478 = vmul.f32 %v270, %v383
        %v479 = vmul.f32 %v271, %v383
        %v480 = vmul.f32 %v272, %v383
        %v481 = vmul.f32 %v273, %v383
        %v482 = vmul.f32 %v274, %v383
        %v483 = vmul.f32 %v275, %v383
        %v484 = vmul.f32 %v276, %v383
        %v485 = vmul.f32 %v277, %v388
        %v486 = vmul.f32 %v278, %v388
        %v487 = vmul.f32 %v279, %v388
        %v488 = vmul.f32 %v280, %v388
        %v489 = vmul.f32 %v281, %v388
        %v490 = vmul.f32 %v282, %v388
        %v491 = vmul.f32 %v283, %v388
        %v492 = vmul.f32 %v284, %v393
        %v493 = vmul.f32 %v285, %v393
        %v494 = vmul.f32 %v286, %v393
        %v495 = vmul.f32 %v287, %v393
        %v496 = vmul.f32 %v288, %v393
        %v497 = vmul.f32 %v289, %v393
        %v498 = vmul.f32 %v290, %v393
        %v499 = vmul.f32 %v291, %v398
        %v500 = vmul.f32 %v292, %v398
        %v501 = vmul.f32 %v293, %v398
        %v502 = vmul.f32 %v294, %v398
        %v503 = vmul.f32 %v295, %v398
        %v504 = vmul.f32 %v296, %v398
        %v505 = vmul.f32 %v297, %v398
        %v506 = vmul.f32 %v298, %v403
        %v507 = vmul.f32 %v299, %v403
        %v508 = vmul.f32 %v300, %v403
        %v509 = vmul.f32 %v301, %v403
        %v510 = vmul.f32 %v302, %v403
        %v511 = vmul.f32 %v303, %v403
        %v512 = vmul.f32 %v304, %v403
        %v513 = vmul.f32 %v305, %v408
        %v514 = vmul.f32 %v306, %v408
        %v515 = vmul.f32 %v307, %v408
        %v516 = vmul.f32 %v308, %v408
        %v517 = vmul.f32 %v309, %v408
        %v518 = vmul.f32 %v310, %v408
        %v519 = vmul.f32 %v311, %v408
        %v520 = vmul.f32 %v312, %v413
        %v521 = vmul.f32 %v313, %v413
        %v522 = vmul.f32 %v314, %v413
        %v523 = vmul.f32 %v315, %v413
        %v524 = vmul.f32 %v316, %v413
        %v525 = vmul.f32 %v317, %v413
        %v526 = vmul.f32 %v318, %v413
        %527 = vst [vmem:[%s196] sm:$0xff] %v415
        %528 = vst [vmem:[%s196 + $0x8] sm:$0xff] %v416
        %529 = vst [vmem:[%s196 + $0x10] sm:$0xff] %v417
        %530 = vst [vmem:[%s196 + $0x18] sm:$0xff] %v418
        %531 = vst [vmem:[%s196 + $0x20] sm:$0xff] %v419
        %532 = vst [vmem:[%s196 + $0x28] sm:$0xff] %v420
        %533 = vst [vmem:[%s196 + $0x30] sm:$0xff] %v421
        %534 = vst [vmem:[%s196 + $0x38] sm:$0xff] %v422
        %535 = vst [vmem:[%s196 + $0x40] sm:$0xff] %v423
        %536 = vst [vmem:[%s196 + $0x48] sm:$0xff] %v424
        %537 = vst [vmem:[%s196 + $0x50] sm:$0xff] %v425
        %538 = vst [vmem:[%s196 + $0x58] sm:$0xff] %v426
        %539 = vst [vmem:[%s196 + $0x60] sm:$0xff] %v427
        %540 = vst [vmem:[%s196 + $0x68] sm:$0xff] %v428
        %541 = vst [vmem:[%s196 + $0x70] sm:$0xff] %v429
        %542 = vst [vmem:[%s196 + $0x78] sm:$0xff] %v430
        %543 = vst [vmem:[%s196 + $0x80] sm:$0xff] %v431
        %544 = vst [vmem:[%s196 + $0x88] sm:$0xff] %v432
        %545 = vst [vmem:[%s196 + $0x90] sm:$0xff] %v433
        %546 = vst [vmem:[%s196 + $0x98] sm:$0xff] %v434
        %547 = vst [vmem:[%s196 + $0xa0] sm:$0xff] %v435
        %548 = vst [vmem:[%s196 + $0xa8] sm:$0xff] %v436
        %549 = vst [vmem:[%s196 + $0xb0] sm:$0xff] %v437
        %550 = vst [vmem:[%s196 + $0xb8] sm:$0xff] %v438
        %551 = vst [vmem:[%s196 + $0xc0] sm:$0xff] %v439
        %552 = vst [vmem:[%s196 + $0xc8] sm:$0xff] %v440
        %553 = vst [vmem:[%s196 + $0xd0] sm:$0xff] %v441
        %554 = vst [vmem:[%s196 + $0xd8] sm:$0xff] %v442
        %555 = vst [vmem:[%s196 + $0xe0] sm:$0xff] %v443
        %556 = vst [vmem:[%s196 + $0xe8] sm:$0xff] %v444
        %557 = vst [vmem:[%s196 + $0xf0] sm:$0xff] %v445
        %558 = vst [vmem:[%s196 + $0xf8] sm:$0xff] %v446
        %559 = vst [vmem:[%s196 + $0x100] sm:$0xff] %v447
        %560 = vst [vmem:[%s196 + $0x108] sm:$0xff] %v448
        %561 = vst [vmem:[%s196 + $0x110] sm:$0xff] %v449
        %562 = vst [vmem:[%s196 + $0x118] sm:$0xff] %v450
        %563 = vst [vmem:[%s196 + $0x120] sm:$0xff] %v451
        %564 = vst [vmem:[%s196 + $0x128] sm:$0xff] %v452
        %565 = vst [vmem:[%s196 + $0x130] sm:$0xff] %v453
        %566 = vst [vmem:[%s196 + $0x138] sm:$0xff] %v454
        %567 = vst [vmem:[%s196 + $0x140] sm:$0xff] %v455
        %568 = vst [vmem:[%s196 + $0x148] sm:$0xff] %v456
        %569 = vst [vmem:[%s196 + $0x150] sm:$0xff] %v457
        %570 = vst [vmem:[%s196 + $0x158] sm:$0xff] %v458
        %571 = vst [vmem:[%s196 + $0x160] sm:$0xff] %v459
        %572 = vst [vmem:[%s196 + $0x168] sm:$0xff] %v460
        %573 = vst [vmem:[%s196 + $0x170] sm:$0xff] %v461
        %574 = vst [vmem:[%s196 + $0x178] sm:$0xff] %v462
        %575 = vst [vmem:[%s196 + $0x180] sm:$0xff] %v463
        %576 = vst [vmem:[%s196 + $0x188] sm:$0xff] %v464
        %577 = vst [vmem:[%s196 + $0x190] sm:$0xff] %v465
        %578 = vst [vmem:[%s196 + $0x198] sm:$0xff] %v466
        %579 = vst [vmem:[%s196 + $0x1a0] sm:$0xff] %v467
        %580 = vst [vmem:[%s196 + $0x1a8] sm:$0xff] %v468
        %581 = vst [vmem:[%s196 + $0x1b0] sm:$0xff] %v469
        %582 = vst [vmem:[%s196 + $0x1b8] sm:$0xff] %v470
        %583 = vst [vmem:[%s196 + $0x1c0] sm:$0xff] %v471
        %584 = vst [vmem:[%s196 + $0x1c8] sm:$0xff] %v472
        %585 = vst [vmem:[%s196 + $0x1d0] sm:$0xff] %v473
        %586 = vst [vmem:[%s196 + $0x1d8] sm:$0xff] %v474
        %587 = vst [vmem:[%s196 + $0x1e0] sm:$0xff] %v475
        %588 = vst [vmem:[%s196 + $0x1e8] sm:$0xff] %v476
        %589 = vst [vmem:[%s196 + $0x1f0] sm:$0xff] %v477
        %590 = vst [vmem:[%s196 + $0x1f8] sm:$0xff] %v478
        %591 = vst [vmem:[%s196 + $0x200] sm:$0xff] %v479
        %592 = vst [vmem:[%s196 + $0x208] sm:$0xff] %v480
        %593 = vst [vmem:[%s196 + $0x210] sm:$0xff] %v481
        %594 = vst [vmem:[%s196 + $0x218] sm:$0xff] %v482
        %595 = vst [vmem:[%s196 + $0x220] sm:$0xff] %v483
        %596 = vst [vmem:[%s196 + $0x228] sm:$0xff] %v484
        %597 = vst [vmem:[%s196 + $0x230] sm:$0xff] %v485
        %598 = vst [vmem:[%s196 + $0x238] sm:$0xff] %v486
        %599 = vst [vmem:[%s196 + $0x240] sm:$0xff] %v487
        %600 = vst [vmem:[%s196 + $0x248] sm:$0xff] %v488
        %601 = vst [vmem:[%s196 + $0x250] sm:$0xff] %v489
        %602 = vst [vmem:[%s196 + $0x258] sm:$0xff] %v490
        %603 = vst [vmem:[%s196 + $0x260] sm:$0xff] %v491
        %604 = vst [vmem:[%s196 + $0x268] sm:$0xff] %v492
        %605 = vst [vmem:[%s196 + $0x270] sm:$0xff] %v493
        %606 = vst [vmem:[%s196 + $0x278] sm:$0xff] %v494
        %607 = vst [vmem:[%s196 + $0x280] sm:$0xff] %v495
        %608 = vst [vmem:[%s196 + $0x288] sm:$0xff] %v496
        %609 = vst [vmem:[%s196 + $0x290] sm:$0xff] %v497
        %610 = vst [vmem:[%s196 + $0x298] sm:$0xff] %v498
        %611 = vst [vmem:[%s196 + $0x2a0] sm:$0xff] %v499
        %612 = vst [vmem:[%s196 + $0x2a8] sm:$0xff] %v500
        %613 = vst [vmem:[%s196 + $0x2b0] sm:$0xff] %v501
        %614 = vst [vmem:[%s196 + $0x2b8] sm:$0xff] %v502
        %615 = vst [vmem:[%s196 + $0x2c0] sm:$0xff] %v503
        %616 = vst [vmem:[%s196 + $0x2c8] sm:$0xff] %v504
        %617 = vst [vmem:[%s196 + $0x2d0] sm:$0xff] %v505
        %618 = vst [vmem:[%s196 + $0x2d8] sm:$0xff] %v506
        %619 = vst [vmem:[%s196 + $0x2e0] sm:$0xff] %v507
        %620 = vst [vmem:[%s196 + $0x2e8] sm:$0xff] %v508
        %621 = vst [vmem:[%s196 + $0x2f0] sm:$0xff] %v509
        %622 = vst [vmem:[%s196 + $0x2f8] sm:$0xff] %v510
        %623 = vst [vmem:[%s196 + $0x300] sm:$0xff] %v511
        %624 = vst [vmem:[%s196 + $0x308] sm:$0xff] %v512
        %625 = vst [vmem:[%s196 + $0x310] sm:$0xff] %v513
        %626 = vst [vmem:[%s196 + $0x318] sm:$0xff] %v514
        %627 = vst [vmem:[%s196 + $0x320] sm:$0xff] %v515
        %628 = vst [vmem:[%s196 + $0x328] sm:$0xff] %v516
        %629 = vst [vmem:[%s196 + $0x330] sm:$0xff] %v517
        %630 = vst [vmem:[%s196 + $0x338] sm:$0xff] %v518
        %631 = vst [vmem:[%s196 + $0x340] sm:$0xff] %v519
        %632 = vst [vmem:[%s196 + $0x348] sm:$0xff] %v520
        %633 = vst [vmem:[%s196 + $0x350] sm:$0xff] %v521
        %634 = vst [vmem:[%s196 + $0x358] sm:$0xff] %v522
        %635 = vst [vmem:[%s196 + $0x360] sm:$0xff] %v523
        %636 = vst [vmem:[%s196 + $0x368] sm:$0xff] %v524
        %637 = vst [vmem:[%s196 + $0x370] sm:$0xff] %v525
        %638 = vst [vmem:[%s196 + $0x378] sm:$0xff] %v526
        %s639 = sand.u32 %s95, 1
        %s640 = scalar_lea.sflag [#allocation4], %s639
        %s641 = sand.u32 %s95, 1
        %s642 = smul.addr %s641, 896
        %s643 = scalar_lea.vmem [#allocation5], %s642
        // Predicated region
        $region33: #{tpu_custom_call.1} parent=27 // pred_check
          %p644 = pneg %p105
        $region34: #{tpu_custom_call.1} parent=27 // pred_check_branch
          %646 = sbr.rel (%p644) target = $region36
        $region35: #{tpu_custom_call.1} parent=27 // pred_region
          %s647 = smul.u32 16, %s23
          %s648 = smul.u32 7, %s24
          %s650 = ssub.s32 14336, 14336
          %651 = vsyncadd %s640, %s650
          %s652 = smul.addr %s647, 7
          %s653 = sadd.s32 %s648, %s652
          %s654 = smul.addr %s653, 128
          %s655 = scalar_lea.hbm %s2, %s654
          %s656 = sshll.u32 %s643, 4
          %s657 = int_to_ptr.vmem [resolvable:$true] %s656
          %662 = dma.vmem_to_hbm [thread:$0]  %s657, 14336, %s655, %s640, 896, 896, 56
        $region36: #{tpu_custom_call.1} parent=27 // pred_fallthru
          _
      $region28: #{tpu_custom_call.1} parent=5 // pred_fallthru
        _
      %p663 = scmp.le.s32.totalorder 2, %s14
      // Predicated region
      $region37: #{tpu_custom_call.1} parent=5 // pred_check
        %p664 = pneg %p663
      $region38: #{tpu_custom_call.1} parent=5 // pred_check_branch
        %666 = sbr.rel (%p664) target = $region40
      $region39: #{tpu_custom_call.1} parent=5 // pred_region
        %s667 = ssub.s32 %s14, 2
        // Predicated region
        $region41: #{tpu_custom_call.1} parent=39 // pred_check
          %p668 = pneg %p111
        $region42: #{tpu_custom_call.1} parent=39 // pred_check_branch
          %670 = sbr.rel (%p668) target = $region44
        $region43: #{tpu_custom_call.1} parent=39 // pred_region
          %s671 = sand.u32 %s96, 1
          %s672 = scalar_lea.sflag [#allocation4], %s671
          %s673 = sand.u32 %s96, 1
          %s674 = smul.addr %s673, 896
          %s675 = scalar_lea.vmem [#allocation5], %s674
          %676 = dma.done %s672, 14336
        $region44: #{tpu_custom_call.1} parent=39 // pred_fallthru
          _
      $region40: #{tpu_custom_call.1} parent=5 // pred_fallthru
        _
    $region6: #{tpu_custom_call.1} parent=1 // loop_footer
      %s18 = sadd.s32 1, %s14
    $region7: #{tpu_custom_call.1} parent=1 // loop_footer_branch
      %13 = sbr.rel target = $region3
    $region8: #{tpu_custom_call.1} parent=1 // loop_exit
      _
    %677 = vsyncpa [#allocation3], 1
    %s678 = scalar_lea.sflag [#allocation3], 1
    %679 = vsyncpa %s678, 1
    %680 = vsyncpa [#allocation4], 1
    %s681 = scalar_lea.sflag [#allocation4], 1
    %682 = vsyncpa %s681, 1

</llo_original>
